<compile_context>
chip_gen: v5e
topology: v5e:2x2
jax: 0.10.0
libtpu: 0.0.40
codegen_flags: <defaults>
</compile_context>

<pallas_src>
import functools

import jax
import jax.numpy as jnp
from jax.experimental import pallas as pl
from jax.experimental.pallas import tpu as pltpu


def _channel_attention_kernel(x_ref, w1_ref, w2_ref, o_ref, sum_ref, max_ref,
                              *, hw_total, hw_tile, bt, need_mask):
    # x_ref: (bt, C, hw_tile); w1_ref: (C//16, C); w2_ref: (C, C//16)
    # o_ref: (bt, C, 1); sum_ref/max_ref: (bt, C, 1) f32 scratch accumulators
    k = pl.program_id(1)
    num_k = pl.num_programs(1)

    @pl.when(k == 0)
    def _init():
        sum_ref[...] = jnp.zeros_like(sum_ref)
        max_ref[...] = jnp.full_like(max_ref, -jnp.inf)

    x = x_ref[...]                                            # (bt, C, hw_tile)
    if need_mask:                                             # static: HW % hw_tile != 0
        lane = jax.lax.broadcasted_iota(jnp.int32, x.shape, 2)
        valid = (k * hw_tile + lane) < hw_total
        x_sum = jnp.where(valid, x, 0.0)
        x_max = jnp.where(valid, x, -jnp.inf)
    else:
        x_sum = x
        x_max = x

    sum_ref[...] += jnp.sum(x_sum, axis=-1, keepdims=True)               # (bt, C, 1)
    max_ref[...] = jnp.maximum(max_ref[...],
                               jnp.max(x_max, axis=-1, keepdims=True))   # (bt, C, 1)

    @pl.when(k == num_k - 1)
    def _finalize():
        w1 = w1_ref[...]                                      # (C//16, C)
        w2 = w2_ref[...]                                      # (C, C//16)
        inv_hw = 1.0 / float(hw_total)                        # mean divides by full HW
        # lane index used to pack [avg | max] into one (C, 2) operand without a concat
        col = jax.lax.broadcasted_iota(jnp.int32, (w2.shape[0], 2), 1)
        for b in range(bt):                                   # static, small unroll
            avg = sum_ref[b] * inv_hw                         # (C, 1)
            mx = max_ref[b]                                   # (C, 1)
            pooled = jnp.where(col == 0, avg, mx)             # (C, 2) == [avg | max]
            # shared MLP on both branches at once: fc2(relu(fc1(.)))
            h = jnp.maximum(
                jnp.dot(w1, pooled, preferred_element_type=jnp.float32), 0.0)  # (C//16, 2)
            out = jnp.dot(w2, h, preferred_element_type=jnp.float32)           # (C, 2)
            att = jax.nn.sigmoid(out[:, 0:1] + out[:, 1:2])                    # (C, 1)
            o_ref[b] = att.astype(o_ref.dtype)


def _choose_tiles(B, C, hw, elem_bytes, buf_budget=4 * 1024 * 1024, max_lane_tile=2048):
    """Pick (batch_tile, hw_tile) so double-buffered slabs fit scoped VMEM on all generations."""
    # HW (lane) tile: as wide as possible, multiple of 128, bounded by the per-buffer budget.
    lanes = (buf_budget // max(C * elem_bytes, 1)) // 128 * 128
    hw_tile = max(128, min(max_lane_tile, lanes))
    if hw <= hw_tile:
        hw_tile = hw                      # full extent -> exempt from the 128-multiple rule
    # Batch tile: amortize per-grid-step overhead when C*HW is small.
    per_b = C * hw_tile * elem_bytes
    bt = int(max(1, min(B, 8, buf_budget // per_b)))
    while B % bt:                         # bt must divide B
        bt -= 1
    return bt, hw_tile


def channel_attention(x, w1, w2):
    """x: (B, C, H, W) NCHW float32; w1: (C//16, C); w2: (C, C//16).
    Returns sigmoid channel-attention weights of shape (B, C, 1, 1)."""
    B, C, H, W = x.shape
    hidden = w1.shape[0]
    assert hidden >= 1, "in_planes must be >= ratio (16)"
    hw = H * W
    xr = x.reshape(B, C, hw)              # free: NCHW is contiguous in (C, H*W)

    bt, hw_tile = _choose_tiles(B, C, hw, x.dtype.itemsize)
    num_k = pl.cdiv(hw, hw_tile)
    need_mask = (hw % hw_tile) != 0

    kernel = functools.partial(
        _channel_attention_kernel,
        hw_total=hw, hw_tile=hw_tile, bt=bt, need_mask=need_mask)

    out = pl.pallas_call(
        kernel,
        out_shape=jax.ShapeDtypeStruct((B, C, 1), x.dtype),
        grid=(B // bt, num_k),
        in_specs=[
            pl.BlockSpec((bt, C, hw_tile), lambda b, k: (b, 0, k)),
            pl.BlockSpec((hidden, C), lambda b, k: (0, 0)),   # constant index -> stays resident
            pl.BlockSpec((C, hidden), lambda b, k: (0, 0)),
        ],
        out_specs=pl.BlockSpec((bt, C, 1), lambda b, k: (b, 0, 0)),
        scratch_shapes=[
            pltpu.VMEM((bt, C, 1), jnp.float32),   # running sum
            pltpu.VMEM((bt, C, 1), jnp.float32),   # running max
        ],
        compiler_params=pltpu.CompilerParams(
            dimension_semantics=("parallel", "arbitrary")),
    )(xr, w1, w2)
    return out.reshape(B, C, 1, 1)


def channel_attention_ref(x, w1, w2):
    # Pure-JAX reference matching the PyTorch forward.
    avg = jnp.mean(x, axis=(2, 3))                            # (B, C)
    mx = jnp.max(x, axis=(2, 3))                              # (B, C)
    h_avg = jnp.maximum(avg @ w1.T, 0.0)
    h_max = jnp.maximum(mx @ w1.T, 0.0)
    out = (h_avg @ w2.T) + (h_max @ w2.T)
    return jax.nn.sigmoid(out)[:, :, None, None]


if __name__ == "__main__":
    key = jax.random.PRNGKey(0)
    kx, k1, k2 = jax.random.split(key, 3)

    B, C, H, W = 2, 32, 16, 16            # in_planes=32 -> hidden = 32 // 16 = 2
    hidden = C // 16

    x = jax.random.normal(kx, (B, C, H, W), dtype=jnp.float32)
    # Conv2d(kernel_size=1, bias=False) weights are plain matrices.
    w1 = jax.random.normal(k1, (hidden, C), dtype=jnp.float32) * 0.1   # fc1: C -> C//16
    w2 = jax.random.normal(k2, (C, hidden), dtype=jnp.float32) * 0.1   # fc2: C//16 -> C

    y = channel_attention(x, w1, w2)
    jax.block_until_ready(y)

    y_ref = channel_attention_ref(x, w1, w2)
    assert y.shape == (B, C, 1, 1)
    assert jnp.allclose(y, y_ref, atol=1e-5, rtol=1e-5)

    print("KERNEL_OK")
</pallas_src>

<mosaic_0001>
module attributes {stable_mosaic.version = 11 : i64} {
  func.func @_channel_attention_kernel(%arg0: i32, %arg1: i32, %arg2: memref<2x32x256xf32, #tpu.memory_space<vmem>>, %arg3: memref<2x32xf32, #tpu.memory_space<vmem>>, %arg4: memref<32x2xf32, #tpu.memory_space<vmem>>, %arg5: memref<2x32x1xf32, #tpu.memory_space<vmem>>, %arg6: memref<2x32x1xf32, #tpu.memory_space<vmem>>, %arg7: memref<2x32x1xf32, #tpu.memory_space<vmem>>) attributes {dimension_semantics = [#tpu.dimension_semantics<parallel>, #tpu.dimension_semantics<arbitrary>], iteration_bounds = array<i64: 1, 1>, scalar_prefetch = 0 : i64, scratch_operands = 2 : i64, tpu.core_type = #tpu.core_type<tc>, window_params = [{transform_indices = @transform_0, window_bounds = array<i64: 2, 32, 256>}, {pipeline_mode = #tpu.pipeline_mode<synchronous>, transform_indices = @transform_1, window_bounds = array<i64: 2, 32>}, {pipeline_mode = #tpu.pipeline_mode<synchronous>, transform_indices = @transform_2, window_bounds = array<i64: 32, 2>}, {transform_indices = @transform_3, window_bounds = array<i64: 2, 32, 1>}]} {
    %c0_i32 = arith.constant 0 : i32
    %0 = arith.cmpi eq, %arg1, %c0_i32 : i32
    %1 = arith.extui %0 : i1 to i32
    %c0_i32_0 = arith.constant 0 : i32
    %2 = arith.cmpi ne, %1, %c0_i32_0 : i32
    scf.if %2 {
      %cst_18 = arith.constant 0.000000e+00 : f32
      %17 = vector.broadcast %cst_18 : f32 to vector<2x32x1xf32>
      %c0_19 = arith.constant 0 : index
      %c0_20 = arith.constant 0 : index
      %c0_21 = arith.constant 0 : index
      %18 = vector.load %arg6[%c0_19, %c0_20, %c0_21] : memref<2x32x1xf32, #tpu.memory_space<vmem>>, vector<2x32x1xf32>
      tpu.vector_store %arg6[%c0_19, %c0_20, %c0_21], %17 {strides = array<i32>} : memref<2x32x1xf32, #tpu.memory_space<vmem>>, vector<2x32x1xf32>,
      %cst_22 = arith.constant 0xFF800000 : f32
      %19 = vector.broadcast %cst_22 : f32 to vector<2x32x1xf32>
      %c0_23 = arith.constant 0 : index
      %c0_24 = arith.constant 0 : index
      %c0_25 = arith.constant 0 : index
      %20 = vector.load %arg7[%c0_23, %c0_24, %c0_25] : memref<2x32x1xf32, #tpu.memory_space<vmem>>, vector<2x32x1xf32>
      tpu.vector_store %arg7[%c0_23, %c0_24, %c0_25], %19 {strides = array<i32>} : memref<2x32x1xf32, #tpu.memory_space<vmem>>, vector<2x32x1xf32>,
    } else {
    }
    %c0 = arith.constant 0 : index
    %c0_1 = arith.constant 0 : index
    %c0_2 = arith.constant 0 : index
    %3 = vector.load %arg2[%c0, %c0_1, %c0_2] : memref<2x32x256xf32, #tpu.memory_space<vmem>>, vector<2x32x256xf32>
    %c0_3 = arith.constant 0 : index
    %c0_4 = arith.constant 0 : index
    %c0_5 = arith.constant 0 : index
    %4 = vector.load %arg6[%c0_3, %c0_4, %c0_5] : memref<2x32x1xf32, #tpu.memory_space<vmem>>, vector<2x32x1xf32>
    %cst = arith.constant dense<0.000000e+00> : vector<2x32xf32>
    %5 = vector.multi_reduction <add>, %3, %cst [2] : vector<2x32x256xf32> to vector<2x32xf32>
    %6 = vector.shape_cast %5 : vector<2x32xf32> to vector<2x32x1xf32>
    %7 = arith.addf %4, %6 : vector<2x32x1xf32>
    %c0_6 = arith.constant 0 : index
    %c0_7 = arith.constant 0 : index
    %c0_8 = arith.constant 0 : index
    %8 = vector.load %arg6[%c0_6, %c0_7, %c0_8] : memref<2x32x1xf32, #tpu.memory_space<vmem>>, vector<2x32x1xf32>
    tpu.vector_store %arg6[%c0_6, %c0_7, %c0_8], %7 {strides = array<i32>} : memref<2x32x1xf32, #tpu.memory_space<vmem>>, vector<2x32x1xf32>,
    %c0_9 = arith.constant 0 : index
    %c0_10 = arith.constant 0 : index
    %c0_11 = arith.constant 0 : index
    %9 = vector.load %arg7[%c0_9, %c0_10, %c0_11] : memref<2x32x1xf32, #tpu.memory_space<vmem>>, vector<2x32x1xf32>
    %cst_12 = arith.constant dense<0xFF800000> : vector<2x32xf32>
    %10 = vector.multi_reduction <maximumf>, %3, %cst_12 [2] : vector<2x32x256xf32> to vector<2x32xf32>
    %11 = vector.shape_cast %10 : vector<2x32xf32> to vector<2x32x1xf32>
    %12 = arith.maximumf %9, %11 : vector<2x32x1xf32>
    %c0_13 = arith.constant 0 : index
    %c0_14 = arith.constant 0 : index
    %c0_15 = arith.constant 0 : index
    %13 = vector.load %arg7[%c0_13, %c0_14, %c0_15] : memref<2x32x1xf32, #tpu.memory_space<vmem>>, vector<2x32x1xf32>
    tpu.vector_store %arg7[%c0_13, %c0_14, %c0_15], %12 {strides = array<i32>} : memref<2x32x1xf32, #tpu.memory_space<vmem>>, vector<2x32x1xf32>,
    %c0_i32_16 = arith.constant 0 : i32
    %14 = arith.cmpi eq, %arg1, %c0_i32_16 : i32
    %15 = arith.extui %14 : i1 to i32
    %c0_i32_17 = arith.constant 0 : i32
    %16 = arith.cmpi ne, %15, %c0_i32_17 : i32
    scf.if %16 {
      %c0_18 = arith.constant 0 : index
      %c0_19 = arith.constant 0 : index
      %17 = vector.load %arg3[%c0_18, %c0_19] : memref<2x32xf32, #tpu.memory_space<vmem>>, vector<2x32xf32>
      %c0_20 = arith.constant 0 : index
      %c0_21 = arith.constant 0 : index
      %18 = vector.load %arg4[%c0_20, %c0_21] : memref<32x2xf32, #tpu.memory_space<vmem>>, vector<32x2xf32>
      %19 = tpu.iota {dimensions = array<i32: 1>} : vector<32x2xi32>
      %c0_22 = arith.constant 0 : index
      %c0_23 = arith.constant 0 : index
      %c0_24 = arith.constant 0 : index
      %20 = vector.load %arg6[%c0_22, %c0_23, %c0_24] : memref<2x32x1xf32, #tpu.memory_space<vmem>>, vector<1x32x1xf32>
      %21 = vector.shape_cast %20 : vector<1x32x1xf32> to vector<32x1xf32>
      %cst_25 = arith.constant 3.906250e-03 : f32
      %22 = vector.broadcast %cst_25 : f32 to vector<32x1xf32>
      %23 = arith.mulf %21, %22 : vector<32x1xf32>
      %c0_26 = arith.constant 0 : index
      %c0_27 = arith.constant 0 : index
      %c0_28 = arith.constant 0 : index
      %24 = vector.load %arg7[%c0_26, %c0_27, %c0_28] : memref<2x32x1xf32, #tpu.memory_space<vmem>>, vector<1x32x1xf32>
      %25 = vector.shape_cast %24 : vector<1x32x1xf32> to vector<32x1xf32>
      %c0_i32_29 = arith.constant 0 : i32
      %26 = vector.broadcast %c0_i32_29 : i32 to vector<32x2xi32>
      %27 = arith.cmpi eq, %19, %26 : vector<32x2xi32>
      %28 = vector.shape_cast %23 : vector<32x1xf32> to vector<32x1xf32>
      %29 = vector.broadcast %28 : vector<32x1xf32> to vector<32x2xf32>
      %30 = vector.shape_cast %25 : vector<32x1xf32> to vector<32x1xf32>
      %31 = vector.broadcast %30 : vector<32x1xf32> to vector<32x2xf32>
      %32 = arith.select %27, %29, %31 : vector<32x2xi1>, vector<32x2xf32>
      %cst_30 = arith.constant dense<0.000000e+00> : vector<2x2xf32>
      %33 = tpu.matmul %17, %32, %cst_30 {dimension_numbers = #tpu.dot_dimension_numbers<[1], [0], [0], [1], [0, 0, 1, 1], [], []>} : vector<2x32xf32>, vector<32x2xf32>, vector<2x2xf32> -> vector<2x2xf32>
      %cst_31 = arith.constant 0.000000e+00 : f32
      %34 = vector.broadcast %cst_31 : f32 to vector<2x2xf32>
      %35 = arith.maximumf %33, %34 : vector<2x2xf32>
      %cst_32 = arith.constant dense<0.000000e+00> : vector<32x2xf32>
      %36 = tpu.matmul %18, %35, %cst_32 {dimension_numbers = #tpu.dot_dimension_numbers<[1], [0], [0], [1], [0, 0, 1, 1], [], []>} : vector<32x2xf32>, vector<2x2xf32>, vector<32x2xf32> -> vector<32x2xf32>
      %37 = vector.extract_strided_slice %36 {offsets = [0, 0], sizes = [32, 1], strides = [1, 1]} : vector<32x2xf32> to vector<32x1xf32>
      %38 = vector.extract_strided_slice %36 {offsets = [0, 1], sizes = [32, 1], strides = [1, 1]} : vector<32x2xf32> to vector<32x1xf32>
      %39 = arith.addf %37, %38 : vector<32x1xf32>
      %40 = arith.negf %39 : vector<32x1xf32>
      %41 = math.exp %40 : vector<32x1xf32>
      %cst_33 = arith.constant 1.000000e+00 : f32
      %42 = vector.broadcast %cst_33 : f32 to vector<32x1xf32>
      %43 = arith.addf %42, %41 : vector<32x1xf32>
      %44 = arith.divf %42, %43 : vector<32x1xf32>
      %c0_34 = arith.constant 0 : index
      %c0_35 = arith.constant 0 : index
      %c0_36 = arith.constant 0 : index
      %45 = vector.load %arg5[%c0_34, %c0_35, %c0_36] : memref<2x32x1xf32, #tpu.memory_space<vmem>>, vector<1x32x1xf32>
      %46 = vector.shape_cast %45 : vector<1x32x1xf32> to vector<32x1xf32>
      %47 = vector.shape_cast %44 : vector<32x1xf32> to vector<1x32x1xf32>
      tpu.vector_store %arg5[%c0_34, %c0_35, %c0_36], %47 {strides = array<i32>} : memref<2x32x1xf32, #tpu.memory_space<vmem>>, vector<1x32x1xf32>,
      %c1 = arith.constant 1 : index
      %c0_37 = arith.constant 0 : index
      %c0_38 = arith.constant 0 : index
      %48 = vector.load %arg6[%c1, %c0_37, %c0_38] : memref<2x32x1xf32, #tpu.memory_space<vmem>>, vector<1x32x1xf32>
      %49 = vector.shape_cast %48 : vector<1x32x1xf32> to vector<32x1xf32>
      %cst_39 = arith.constant 3.906250e-03 : f32
      %50 = vector.broadcast %cst_39 : f32 to vector<32x1xf32>
      %51 = arith.mulf %49, %50 : vector<32x1xf32>
      %c1_40 = arith.constant 1 : index
      %c0_41 = arith.constant 0 : index
      %c0_42 = arith.constant 0 : index
      %52 = vector.load %arg7[%c1_40, %c0_41, %c0_42] : memref<2x32x1xf32, #tpu.memory_space<vmem>>, vector<1x32x1xf32>
      %53 = vector.shape_cast %52 : vector<1x32x1xf32> to vector<32x1xf32>
      %c0_i32_43 = arith.constant 0 : i32
      %54 = vector.broadcast %c0_i32_43 : i32 to vector<32x2xi32>
      %55 = arith.cmpi eq, %19, %54 : vector<32x2xi32>
      %56 = vector.shape_cast %51 : vector<32x1xf32> to vector<32x1xf32>
      %57 = vector.broadcast %56 : vector<32x1xf32> to vector<32x2xf32>
      %58 = vector.shape_cast %53 : vector<32x1xf32> to vector<32x1xf32>
      %59 = vector.broadcast %58 : vector<32x1xf32> to vector<32x2xf32>
      %60 = arith.select %55, %57, %59 : vector<32x2xi1>, vector<32x2xf32>
      %cst_44 = arith.constant dense<0.000000e+00> : vector<2x2xf32>
      %61 = tpu.matmul %17, %60, %cst_44 {dimension_numbers = #tpu.dot_dimension_numbers<[1], [0], [0], [1], [0, 0, 1, 1], [], []>} : vector<2x32xf32>, vector<32x2xf32>, vector<2x2xf32> -> vector<2x2xf32>
      %cst_45 = arith.constant 0.000000e+00 : f32
      %62 = vector.broadcast %cst_45 : f32 to vector<2x2xf32>
      %63 = arith.maximumf %61, %62 : vector<2x2xf32>
      %cst_46 = arith.constant dense<0.000000e+00> : vector<32x2xf32>
      %64 = tpu.matmul %18, %63, %cst_46 {dimension_numbers = #tpu.dot_dimension_numbers<[1], [0], [0], [1], [0, 0, 1, 1], [], []>} : vector<32x2xf32>, vector<2x2xf32>, vector<32x2xf32> -> vector<32x2xf32>
      %65 = vector.extract_strided_slice %64 {offsets = [0, 0], sizes = [32, 1], strides = [1, 1]} : vector<32x2xf32> to vector<32x1xf32>
      %66 = vector.extract_strided_slice %64 {offsets = [0, 1], sizes = [32, 1], strides = [1, 1]} : vector<32x2xf32> to vector<32x1xf32>
      %67 = arith.addf %65, %66 : vector<32x1xf32>
      %68 = arith.negf %67 : vector<32x1xf32>
      %69 = math.exp %68 : vector<32x1xf32>
      %cst_47 = arith.constant 1.000000e+00 : f32
      %70 = vector.broadcast %cst_47 : f32 to vector<32x1xf32>
      %71 = arith.addf %70, %69 : vector<32x1xf32>
      %72 = arith.divf %70, %71 : vector<32x1xf32>
      %c1_48 = arith.constant 1 : index
      %c0_49 = arith.constant 0 : index
      %c0_50 = arith.constant 0 : index
      %73 = vector.load %arg5[%c1_48, %c0_49, %c0_50] : memref<2x32x1xf32, #tpu.memory_space<vmem>>, vector<1x32x1xf32>
      %74 = vector.shape_cast %73 : vector<1x32x1xf32> to vector<32x1xf32>
      %75 = vector.shape_cast %72 : vector<32x1xf32> to vector<1x32x1xf32>
      tpu.vector_store %arg5[%c1_48, %c0_49, %c0_50], %75 {strides = array<i32>} : memref<2x32x1xf32, #tpu.memory_space<vmem>>, vector<1x32x1xf32>,
    } else {
    }
    return
  }
  func.func @transform_0(%arg0: i32, %arg1: i32) -> (i32, i32, i32) {
    %c0_i32 = arith.constant 0 : i32
    %c0_i32_0 = arith.constant 0 : i32
    return %arg0, %c0_i32, %arg1 : i32, i32, i32
  }
  func.func @transform_1(%arg0: i32, %arg1: i32) -> (i32, i32) {
    %c0_i32 = arith.constant 0 : i32
    %c0_i32_0 = arith.constant 0 : i32
    %c0_i32_1 = arith.constant 0 : i32
    return %c0_i32, %c0_i32_0 : i32, i32
  }
  func.func @transform_2(%arg0: i32, %arg1: i32) -> (i32, i32) {
    %c0_i32 = arith.constant 0 : i32
    %c0_i32_0 = arith.constant 0 : i32
    %c0_i32_1 = arith.constant 0 : i32
    return %c0_i32, %c0_i32_0 : i32, i32
  }
  func.func @transform_3(%arg0: i32, %arg1: i32) -> (i32, i32, i32) {
    %c0_i32 = arith.constant 0 : i32
    %c0_i32_0 = arith.constant 0 : i32
    %c0_i32_1 = arith.constant 0 : i32
    return %arg0, %c0_i32, %c0_i32_0 : i32, i32, i32
  }
}

</mosaic_0001>

<llo_original>
// kernel: tpu_custom_call.1
$region0: #{tpu_custom_call.1}
  #allocation0 [shape = 'u32[]', space=smem, size = 0x4, offset = 0x4, fixed_abs, tag = 'smem constant byte address 0x4 - core index']
  #allocation1 [shape = 'u32[72,128]{1,0:T(1,128)}', space=vmem, size = 0x9000, scoped, tag = 'internal scratch']
  #allocation2 [shape = 'f32[2,32,1]{2,1,0:T(8,128)}', space=vmem, size = 0x8000, scoped, tag = 'scratch operand']
  #allocation3 [shape = 'f32[2,32,1]{2,1,0:T(8,128)}', space=vmem, size = 0x8000, scoped, tag = 'scratch operand']
  %s0 = inlined_call_operand.hbm [shape: f32[2,32,256], index: 0, kind: input, shape index: {}]
  %s1 = inlined_call_operand.vmem [shape: f32[2,32], index: 1, kind: input, shape index: {}]
  %s2 = inlined_call_operand.vmem [shape: f32[32,2], index: 2, kind: input, shape index: {}]
  %s3 = inlined_call_operand.vmem [shape: f32[2,32,1], index: 3, kind: output, shape index: {}]
  %s4 = sld [smem:[#allocation0]]
  $region34: #{tpu_custom_call.1} parent=0
    _
  %s6 = ssub.s32 1, %s4
  %s7 = scalar_select 0, %s6, %s4
  $region1: #{tpu_custom_call.1} parent=0
    #allocation4 [shape = 'u8[65536]{0}', space=vmem, size = 0x10000, scoped, tag = 'input window, operand 0, single buffered']
    #allocation5 [shape = 's32[1]{0}', space=sflag, size = 0x4, scoped, tag = 'scoped memory for tpu_custom_call.1']
    %8 = vsyncpa [#allocation5], 0
    // Predicated region
    $region2: #{tpu_custom_call.1} parent=1 // pred_check
      _
    $region3: #{tpu_custom_call.1} parent=1 // pred_check_branch
      %10 = sbr.rel (0) target = $region5
    $region4: #{tpu_custom_call.1} parent=1 // pred_region
      %12 = vsyncadd [#allocation5], 0
      %s13 = sshll.u32 %s0, 4
      %s14 = int_to_ptr.hbm [resolvable:$true] %s13
      %s15 = sshll.u32 [#allocation4], 4
      %s16 = int_to_ptr.vmem [resolvable:$true] %s15
      %21 = dma.hbm_to_vmem [thread:$0]  %s14, 2048, %s16, [#allocation5], 256, 256, 16
    $region5: #{tpu_custom_call.1} parent=1 // pred_fallthru
      _
    // Predicated region
    $region6: #{tpu_custom_call.1} parent=1 // pred_check
      _
    $region7: #{tpu_custom_call.1} parent=1 // pred_check_branch
      %23 = sbr.rel (0) target = $region9
    $region8: #{tpu_custom_call.1} parent=1 // pred_region
      _
    $region9: #{tpu_custom_call.1} parent=1 // pred_fallthru
      _
    // Predicated region
    $region10: #{tpu_custom_call.1} parent=1 // pred_check
      _
    $region11: #{tpu_custom_call.1} parent=1 // pred_check_branch
      %25 = sbr.rel (0) target = $region13
    $region12: #{tpu_custom_call.1} parent=1 // pred_region
      _
    $region13: #{tpu_custom_call.1} parent=1 // pred_fallthru
      _
    // Predicated region
    $region14: #{tpu_custom_call.1} parent=1 // pred_check
      _
    $region15: #{tpu_custom_call.1} parent=1 // pred_check_branch
      %27 = sbr.rel (0) target = $region17
    $region16: #{tpu_custom_call.1} parent=1 // pred_region
      %29 = dma.done [#allocation5], 2048
    $region17: #{tpu_custom_call.1} parent=1 // pred_fallthru
      _
    %p30 = scmp.eq.s32.totalorder 0, 0
    // Predicated region
    $region18: #{tpu_custom_call.1} parent=1 // pred_check
      %p31 = pneg %p30
    $region19: #{tpu_custom_call.1} parent=1 // pred_check_branch
      %33 = sbr.rel (%p31) target = $region21
    $region20: #{tpu_custom_call.1} parent=1 // pred_region
      %vm34 = vcmask 7168
      %35 = vst.msk [vmem:[#allocation2] sm:$0xff] %vm34, 0.0
      %36 = vst.msk [vmem:[#allocation2 + $0x8] sm:$0xff] %vm34, 0.0
      %37 = vst.msk [vmem:[#allocation2 + $0x10] sm:$0xff] %vm34, 0.0
      %38 = vst.msk [vmem:[#allocation2 + $0x18] sm:$0xff] %vm34, 0.0
      %39 = vst.msk [vmem:[#allocation2 + $0x20] sm:$0xff] %vm34, 0.0
      %40 = vst.msk [vmem:[#allocation2 + $0x28] sm:$0xff] %vm34, 0.0
      %41 = vst.msk [vmem:[#allocation2 + $0x30] sm:$0xff] %vm34, 0.0
      %42 = vst.msk [vmem:[#allocation2 + $0x38] sm:$0xff] %vm34, 0.0
      %43 = vst.msk [vmem:[#allocation3] sm:$0xff] %vm34, -inf
      %44 = vst.msk [vmem:[#allocation3 + $0x8] sm:$0xff] %vm34, -inf
      %45 = vst.msk [vmem:[#allocation3 + $0x10] sm:$0xff] %vm34, -inf
      %46 = vst.msk [vmem:[#allocation3 + $0x18] sm:$0xff] %vm34, -inf
      %47 = vst.msk [vmem:[#allocation3 + $0x20] sm:$0xff] %vm34, -inf
      %48 = vst.msk [vmem:[#allocation3 + $0x28] sm:$0xff] %vm34, -inf
      %49 = vst.msk [vmem:[#allocation3 + $0x30] sm:$0xff] %vm34, -inf
      %50 = vst.msk [vmem:[#allocation3 + $0x38] sm:$0xff] %vm34, -inf
    $region21: #{tpu_custom_call.1} parent=1 // pred_fallthru
      _
    %v51 = vld [vmem:[#allocation4] sm:$0xff]
    %v52 = vld [vmem:[#allocation4 + $0x8] sm:$0xff]
    %v53 = vld [vmem:[#allocation4 + $0x10] sm:$0xff]
    %v54 = vld [vmem:[#allocation4 + $0x18] sm:$0xff]
    %v55 = vld [vmem:[#allocation4 + $0x20] sm:$0xff]
    %v56 = vld [vmem:[#allocation4 + $0x28] sm:$0xff]
    %v57 = vld [vmem:[#allocation4 + $0x30] sm:$0xff]
    %v58 = vld [vmem:[#allocation4 + $0x38] sm:$0xff]
    %v59 = vld [vmem:[#allocation4 + $0x40] sm:$0xff]
    %v60 = vld [vmem:[#allocation4 + $0x48] sm:$0xff]
    %v61 = vld [vmem:[#allocation4 + $0x50] sm:$0xff]
    %v62 = vld [vmem:[#allocation4 + $0x58] sm:$0xff]
    %v63 = vld [vmem:[#allocation4 + $0x60] sm:$0xff]
    %v64 = vld [vmem:[#allocation4 + $0x68] sm:$0xff]
    %v65 = vld [vmem:[#allocation4 + $0x70] sm:$0xff]
    %v66 = vld [vmem:[#allocation4 + $0x78] sm:$0xff]
    %v67 = vld [vmem:[#allocation2] sm:$0xff]
    %v68 = vld [vmem:[#allocation2 + $0x8] sm:$0xff]
    %v69 = vld [vmem:[#allocation2 + $0x10] sm:$0xff]
    %v70 = vld [vmem:[#allocation2 + $0x18] sm:$0xff]
    %v71 = vld [vmem:[#allocation2 + $0x20] sm:$0xff]
    %v72 = vld [vmem:[#allocation2 + $0x28] sm:$0xff]
    %v73 = vld [vmem:[#allocation2 + $0x30] sm:$0xff]
    %v74 = vld [vmem:[#allocation2 + $0x38] sm:$0xff]
    %v75 = vadd.f32 %v51, %v52
    %76 = vadd.xlane.f32.xlu0 %v75
    %v77 = vpop.xlane.xlu0 %76
    %v78 = vadd.f32 %v53, %v54
    %79 = vadd.xlane.f32.xlu0 %v78
    %v80 = vpop.xlane.xlu0 %79
    %v81 = vadd.f32 %v55, %v56
    %82 = vadd.xlane.f32.xlu0 %v81
    %v83 = vpop.xlane.xlu0 %82
    %v84 = vadd.f32 %v57, %v58
    %85 = vadd.xlane.f32.xlu0 %v84
    %v86 = vpop.xlane.xlu0 %85
    %v87 = vadd.f32 %v59, %v60
    %88 = vadd.xlane.f32.xlu0 %v87
    %v89 = vpop.xlane.xlu0 %88
    %v90 = vadd.f32 %v61, %v62
    %91 = vadd.xlane.f32.xlu0 %v90
    %v92 = vpop.xlane.xlu0 %91
    %v93 = vadd.f32 %v63, %v64
    %94 = vadd.xlane.f32.xlu0 %v93
    %v95 = vpop.xlane.xlu0 %94
    %v96 = vadd.f32 %v65, %v66
    %97 = vadd.xlane.f32.xlu0 %v96
    %v98 = vpop.xlane.xlu0 %97
    %v99 = vadd.f32 %v67, %v77
    %v100 = vadd.f32 %v68, %v80
    %v101 = vadd.f32 %v69, %v83
    %v102 = vadd.f32 %v70, %v86
    %v103 = vadd.f32 %v71, %v89
    %v104 = vadd.f32 %v72, %v92
    %v105 = vadd.f32 %v73, %v95
    %v106 = vadd.f32 %v74, %v98
    %vm107 = vcmask 7168
    %108 = vst.msk [vmem:[#allocation2] sm:$0xff] %vm107, %v99
    %109 = vst.msk [vmem:[#allocation2 + $0x8] sm:$0xff] %vm107, %v100
    %110 = vst.msk [vmem:[#allocation2 + $0x10] sm:$0xff] %vm107, %v101
    %111 = vst.msk [vmem:[#allocation2 + $0x18] sm:$0xff] %vm107, %v102
    %112 = vst.msk [vmem:[#allocation2 + $0x20] sm:$0xff] %vm107, %v103
    %113 = vst.msk [vmem:[#allocation2 + $0x28] sm:$0xff] %vm107, %v104
    %114 = vst.msk [vmem:[#allocation2 + $0x30] sm:$0xff] %vm107, %v105
    %115 = vst.msk [vmem:[#allocation2 + $0x38] sm:$0xff] %vm107, %v106
    %v116 = vld [vmem:[#allocation3] sm:$0xff]
    %v117 = vld [vmem:[#allocation3 + $0x8] sm:$0xff]
    %v118 = vld [vmem:[#allocation3 + $0x10] sm:$0xff]
    %v119 = vld [vmem:[#allocation3 + $0x18] sm:$0xff]
    %v120 = vld [vmem:[#allocation3 + $0x20] sm:$0xff]
    %v121 = vld [vmem:[#allocation3 + $0x28] sm:$0xff]
    %v122 = vld [vmem:[#allocation3 + $0x30] sm:$0xff]
    %v123 = vld [vmem:[#allocation3 + $0x38] sm:$0xff]
    %v124 = vmax.f32 %v51, %v52
    %125 = vmax.xlane.f32.xlu0 %v124
    %v126 = vpop.xlane.xlu0 %125
    %v127 = vmax.f32 %v53, %v54
    %128 = vmax.xlane.f32.xlu0 %v127
    %v129 = vpop.xlane.xlu0 %128
    %v130 = vmax.f32 %v55, %v56
    %131 = vmax.xlane.f32.xlu0 %v130
    %v132 = vpop.xlane.xlu0 %131
    %v133 = vmax.f32 %v57, %v58
    %134 = vmax.xlane.f32.xlu0 %v133
    %v135 = vpop.xlane.xlu0 %134
    %v136 = vmax.f32 %v59, %v60
    %137 = vmax.xlane.f32.xlu0 %v136
    %v138 = vpop.xlane.xlu0 %137
    %v139 = vmax.f32 %v61, %v62
    %140 = vmax.xlane.f32.xlu0 %v139
    %v141 = vpop.xlane.xlu0 %140
    %v142 = vmax.f32 %v63, %v64
    %143 = vmax.xlane.f32.xlu0 %v142
    %v144 = vpop.xlane.xlu0 %143
    %v145 = vmax.f32 %v65, %v66
    %146 = vmax.xlane.f32.xlu0 %v145
    %v147 = vpop.xlane.xlu0 %146
    %v148 = vmax.f32 %v116, %v126
    %v149 = vmax.f32 %v117, %v129
    %v150 = vmax.f32 %v118, %v132
    %v151 = vmax.f32 %v119, %v135
    %v152 = vmax.f32 %v120, %v138
    %v153 = vmax.f32 %v121, %v141
    %v154 = vmax.f32 %v122, %v144
    %v155 = vmax.f32 %v123, %v147
    %156 = vst.msk [vmem:[#allocation3] sm:$0xff] %vm107, %v148
    %157 = vst.msk [vmem:[#allocation3 + $0x8] sm:$0xff] %vm107, %v149
    %158 = vst.msk [vmem:[#allocation3 + $0x10] sm:$0xff] %vm107, %v150
    %159 = vst.msk [vmem:[#allocation3 + $0x18] sm:$0xff] %vm107, %v151
    %160 = vst.msk [vmem:[#allocation3 + $0x20] sm:$0xff] %vm107, %v152
    %161 = vst.msk [vmem:[#allocation3 + $0x28] sm:$0xff] %vm107, %v153
    %162 = vst.msk [vmem:[#allocation3 + $0x30] sm:$0xff] %vm107, %v154
    %163 = vst.msk [vmem:[#allocation3 + $0x38] sm:$0xff] %vm107, %v155
    // Predicated region
    $region22: #{tpu_custom_call.1} parent=1 // pred_check
      %p164 = pneg %p30
    $region23: #{tpu_custom_call.1} parent=1 // pred_check_branch
      %166 = sbr.rel (%p164) target = $region25
    $region24: #{tpu_custom_call.1} parent=1 // pred_region
      %v167 = vld [vmem:[%s1] sm:$0x3]
      %v168 = vld [vmem:[%s2] sm:$0xff]
      %v169 = vld [vmem:[%s2 + $0x8] sm:$0xff]
      %v170 = vld [vmem:[%s2 + $0x10] sm:$0xff]
      %v171 = vld [vmem:[%s2 + $0x18] sm:$0xff]
      %v172 = vlaneseq
      %v173 = vand.u32 %v172, 127
      %v174 = vld [vmem:[#allocation2] sm:$0xff]
      %v175 = vld [vmem:[#allocation2 + $0x8] sm:$0xff]
      %v176 = vld [vmem:[#allocation2 + $0x10] sm:$0xff]
      %v177 = vld [vmem:[#allocation2 + $0x18] sm:$0xff]
      %v178 = vmul.f32 %v174, 0.00390625
      %v179 = vmul.f32 %v175, 0.00390625
      %v180 = vmul.f32 %v176, 0.00390625
      %v181 = vmul.f32 %v177, 0.00390625
      %v182 = vld [vmem:[#allocation3] sm:$0xff]
      %v183 = vld [vmem:[#allocation3 + $0x8] sm:$0xff]
      %v184 = vld [vmem:[#allocation3 + $0x10] sm:$0xff]
      %v185 = vld [vmem:[#allocation3 + $0x18] sm:$0xff]
      %vm186 = vcmp.eq.s32.totalorder %v173, 0
      %188 = vset.pattern.permute.xlu0 0
      %189 = vperm.xlu0 %188, %v178
      %v190 = vpop.permute.xlu0 %189
      %193 = vset.pattern.permute.xlu0 0
      %194 = vperm.xlu0 %193, %v179
      %v195 = vpop.permute.xlu0 %194
      %198 = vset.pattern.permute.xlu0 0
      %199 = vperm.xlu0 %198, %v180
      %v200 = vpop.permute.xlu0 %199
      %203 = vset.pattern.permute.xlu0 0
      %204 = vperm.xlu0 %203, %v181
      %v205 = vpop.permute.xlu0 %204
      %208 = vset.pattern.permute.xlu0 0
      %209 = vperm.xlu0 %208, %v182
      %v210 = vpop.permute.xlu0 %209
      %213 = vset.pattern.permute.xlu0 0
      %214 = vperm.xlu0 %213, %v183
      %v215 = vpop.permute.xlu0 %214
      %218 = vset.pattern.permute.xlu0 0
      %219 = vperm.xlu0 %218, %v184
      %v220 = vpop.permute.xlu0 %219
      %223 = vset.pattern.permute.xlu0 0
      %224 = vperm.xlu0 %223, %v185
      %v225 = vpop.permute.xlu0 %224
      %v227 = vsel %vm186, %v190, %v210
      %v228 = vsel %vm186, %v195, %v215
      %v229 = vsel %vm186, %v200, %v220
      %v230 = vsel %vm186, %v205, %v225
      %vm231 = vcmask 261120
      %v233 = vsel %vm231, %v167, 0
      %235 = vmatpush.msra.mxu0 0.0
      %236 = vmatpush.msra.mxu0 0.0
      %237 = vmatpush.msra.mxu0 0.0
      %238 = vmatpush.msra.mxu0 0.0
      %239 = vmatpush.msra.mxu0 0.0
      %240 = vmatpush.msra.mxu0 0.0
      %241 = vmatpush.msra.mxu0 0.0
      %242 = vmatpush.msra.mxu0 0.0
      %243 = vmatpush.msra.mxu0 0.0
      %244 = vmatpush.msra.mxu0 0.0
      %245 = vmatpush.msra.mxu0 0.0
      %246 = vmatpush.msra.mxu0 0.0
      %247 = vmatpush.msra.mxu0 %v230
      %248 = vmatpush.msra.mxu0 %v229
      %249 = vmatpush.msra.mxu0 %v228
      %250 = vmatpush.msra.mxu0 %v227
      %251 = vmatmul.f32.gmra.mxu0 %v233
      %v252 = vpop.f32.mrf.mxu0
      %v253 = vadd.f32 0.0, %v252
      %254 = vdwg.mxu0
      %v255 = vmax.f32 %v253, 0.0
      %vm256 = vcmask 15360
      %v258 = vsel %vm256, %v168, 0
      %v261 = vsel %vm256, %v169, 0
      %v264 = vsel %vm256, %v170, 0
      %v267 = vsel %vm256, %v171, 0
      %vm269 = vcmask 1041408
      %v271 = vsel %vm269, %v255, 0
      %273 = vmatpush.msra.mxu0 0.0
      %274 = vmatpush.msra.mxu0 0.0
      %275 = vmatpush.msra.mxu0 0.0
      %276 = vmatpush.msra.mxu0 0.0
      %277 = vmatpush.msra.mxu0 0.0
      %278 = vmatpush.msra.mxu0 0.0
      %279 = vmatpush.msra.mxu0 0.0
      %280 = vmatpush.msra.mxu0 0.0
      %281 = vmatpush.msra.mxu0 0.0
      %282 = vmatpush.msra.mxu0 0.0
      %283 = vmatpush.msra.mxu0 0.0
      %284 = vmatpush.msra.mxu0 0.0
      %285 = vmatpush.msra.mxu0 0.0
      %286 = vmatpush.msra.mxu0 0.0
      %287 = vmatpush.msra.mxu0 0.0
      %288 = vmatpush.msra.mxu0 %v271
      %289 = vmatmul.f32.gmra.mxu0 %v258
      %v290 = vpop.f32.mrf.mxu0
      %v291 = vadd.f32 0.0, %v290
      %292 = vmatmul.f32.gmra.mxu0 %v261
      %v293 = vpop.f32.mrf.mxu0
      %v294 = vadd.f32 0.0, %v293
      %295 = vmatmul.f32.gmra.mxu0 %v264
      %v296 = vpop.f32.mrf.mxu0
      %v297 = vadd.f32 0.0, %v296
      %298 = vmatmul.f32.gmra.mxu0 %v267
      %v299 = vpop.f32.mrf.mxu0
      %v300 = vadd.f32 0.0, %v299
      %301 = vdwg.mxu0
      %306 = vrot.lane.b32.xlu0 %v291, 127
      %v307 = vpop.permute.xlu0 %306
      %308 = vrot.lane.b32.xlu0 %v294, 127
      %v309 = vpop.permute.xlu0 %308
      %310 = vrot.lane.b32.xlu0 %v297, 127
      %v311 = vpop.permute.xlu0 %310
      %312 = vrot.lane.b32.xlu0 %v300, 127
      %v313 = vpop.permute.xlu0 %312
      %v318 = vadd.f32 %v291, %v307
      %v319 = vadd.f32 %v294, %v309
      %v320 = vadd.f32 %v297, %v311
      %v321 = vadd.f32 %v300, %v313
      %v322 = vxor.u32 %v318, 2147483648
      %v323 = vxor.u32 %v319, 2147483648
      %v324 = vxor.u32 %v320, 2147483648
      %v325 = vxor.u32 %v321, 2147483648
      %v326 = vmul.f32 %v322, 1.442695
      %v327 = vpow.pop %v326
      %v328 = vmul.f32 %v323, 1.442695
      %v329 = vpow.pop %v328
      %v330 = vmul.f32 %v324, 1.442695
      %v331 = vpow.pop %v330
      %v332 = vmul.f32 %v325, 1.442695
      %v333 = vpow.pop %v332
      %v334 = vadd.f32 %v327, 1.0
      %v335 = vadd.f32 %v329, 1.0
      %v336 = vadd.f32 %v331, 1.0
      %v337 = vadd.f32 %v333, 1.0
      %v338 = vrcp.pop %v334
      %v339 = vmul.f32 %v334, %v338
      %v340 = vsub.f32 1.0, %v339
      %v341 = vmul.f32 %v338, %v340
      %v342 = vadd.f32 %v338, %v341
      %vm343 = vweird.f32 %v334
      %vm344 = vweird.f32 %v338
      %vm345 = vmor %vm343, %vm344
      %v346 = vsel %vm345, %v338, %v342
      %v347 = vand.u32 2147483647, %v334
      %vm348 = vcmp.eq.f32.partialorder %v347, 8.507059e+37
      %v349 = vand.u32 %v334, 2147483648
      %v350 = vor.u32 1.1754944e-38, %v349
      %v351 = vsel %vm348, %v350, %v346
      %v352 = vmul.f32 1.0, %v351
      %v353 = vrcp.pop %v335
      %v354 = vmul.f32 %v335, %v353
      %v355 = vsub.f32 1.0, %v354
      %v356 = vmul.f32 %v353, %v355
      %v357 = vadd.f32 %v353, %v356
      %vm358 = vweird.f32 %v335
      %vm359 = vweird.f32 %v353
      %vm360 = vmor %vm358, %vm359
      %v361 = vsel %vm360, %v353, %v357
      %v362 = vand.u32 2147483647, %v335
      %vm363 = vcmp.eq.f32.partialorder %v362, 8.507059e+37
      %v364 = vand.u32 %v335, 2147483648
      %v365 = vor.u32 1.1754944e-38, %v364
      %v366 = vsel %vm363, %v365, %v361
      %v367 = vmul.f32 1.0, %v366
      %v368 = vrcp.pop %v336
      %v369 = vmul.f32 %v336, %v368
      %v370 = vsub.f32 1.0, %v369
      %v371 = vmul.f32 %v368, %v370
      %v372 = vadd.f32 %v368, %v371
      %vm373 = vweird.f32 %v336
      %vm374 = vweird.f32 %v368
      %vm375 = vmor %vm373, %vm374
      %v376 = vsel %vm375, %v368, %v372
      %v377 = vand.u32 2147483647, %v336
      %vm378 = vcmp.eq.f32.partialorder %v377, 8.507059e+37
      %v379 = vand.u32 %v336, 2147483648
      %v380 = vor.u32 1.1754944e-38, %v379
      %v381 = vsel %vm378, %v380, %v376
      %v382 = vmul.f32 1.0, %v381
      %v383 = vrcp.pop %v337
      %v384 = vmul.f32 %v337, %v383
      %v385 = vsub.f32 1.0, %v384
      %v386 = vmul.f32 %v383, %v385
      %v387 = vadd.f32 %v383, %v386
      %vm388 = vweird.f32 %v337
      %vm389 = vweird.f32 %v383
      %vm390 = vmor %vm388, %vm389
      %v391 = vsel %vm390, %v383, %v387
      %v392 = vand.u32 2147483647, %v337
      %vm393 = vcmp.eq.f32.partialorder %v392, 8.507059e+37
      %v394 = vand.u32 %v337, 2147483648
      %v395 = vor.u32 1.1754944e-38, %v394
      %v396 = vsel %vm393, %v395, %v391
      %v397 = vmul.f32 1.0, %v396
      %398 = vst.msk [vmem:[%s3] sm:$0xff] %vm107, %v352
      %399 = vst.msk [vmem:[%s3 + $0x8] sm:$0xff] %vm107, %v367
      %400 = vst.msk [vmem:[%s3 + $0x10] sm:$0xff] %vm107, %v382
      %401 = vst.msk [vmem:[%s3 + $0x18] sm:$0xff] %vm107, %v397
      %s402 = scalar_lea.vmem [#allocation2], 32
      %v403 = vld [vmem:[%s402] sm:$0xff]
      %v404 = vld [vmem:[%s402 + $0x8] sm:$0xff]
      %v405 = vld [vmem:[%s402 + $0x10] sm:$0xff]
      %v406 = vld [vmem:[%s402 + $0x18] sm:$0xff]
      %v407 = vmul.f32 %v403, 0.00390625
      %v408 = vmul.f32 %v404, 0.00390625
      %v409 = vmul.f32 %v405, 0.00390625
      %v410 = vmul.f32 %v406, 0.00390625
      %s411 = scalar_lea.vmem [#allocation3], 32
      %v412 = vld [vmem:[%s411] sm:$0xff]
      %v413 = vld [vmem:[%s411 + $0x8] sm:$0xff]
      %v414 = vld [vmem:[%s411 + $0x10] sm:$0xff]
      %v415 = vld [vmem:[%s411 + $0x18] sm:$0xff]
      %417 = vset.pattern.permute.xlu0 0
      %418 = vperm.xlu0 %417, %v407
      %v419 = vpop.permute.xlu0 %418
      %422 = vset.pattern.permute.xlu0 0
      %423 = vperm.xlu0 %422, %v408
      %v424 = vpop.permute.xlu0 %423
      %427 = vset.pattern.permute.xlu0 0
      %428 = vperm.xlu0 %427, %v409
      %v429 = vpop.permute.xlu0 %428
      %432 = vset.pattern.permute.xlu0 0
      %433 = vperm.xlu0 %432, %v410
      %v434 = vpop.permute.xlu0 %433
      %437 = vset.pattern.permute.xlu0 0
      %438 = vperm.xlu0 %437, %v412
      %v439 = vpop.permute.xlu0 %438
      %442 = vset.pattern.permute.xlu0 0
      %443 = vperm.xlu0 %442, %v413
      %v444 = vpop.permute.xlu0 %443
      %447 = vset.pattern.permute.xlu0 0
      %448 = vperm.xlu0 %447, %v414
      %v449 = vpop.permute.xlu0 %448
      %452 = vset.pattern.permute.xlu0 0
      %453 = vperm.xlu0 %452, %v415
      %v454 = vpop.permute.xlu0 %453
      %v456 = vsel %vm186, %v419, %v439
      %v457 = vsel %vm186, %v424, %v444
      %v458 = vsel %vm186, %v429, %v449
      %v459 = vsel %vm186, %v434, %v454
      %460 = vmatpush.msra.mxu0 0.0
      %461 = vmatpush.msra.mxu0 0.0
      %462 = vmatpush.msra.mxu0 0.0
      %463 = vmatpush.msra.mxu0 0.0
      %464 = vmatpush.msra.mxu0 0.0
      %465 = vmatpush.msra.mxu0 0.0
      %466 = vmatpush.msra.mxu0 0.0
      %467 = vmatpush.msra.mxu0 0.0
      %468 = vmatpush.msra.mxu0 0.0
      %469 = vmatpush.msra.mxu0 0.0
      %470 = vmatpush.msra.mxu0 0.0
      %471 = vmatpush.msra.mxu0 0.0
      %472 = vmatpush.msra.mxu0 %v459
      %473 = vmatpush.msra.mxu0 %v458
      %474 = vmatpush.msra.mxu0 %v457
      %475 = vmatpush.msra.mxu0 %v456
      %476 = vmatmul.f32.gmra.mxu0 %v233
      %v477 = vpop.f32.mrf.mxu0
      %v478 = vadd.f32 0.0, %v477
      %479 = vdwg.mxu0
      %v480 = vmax.f32 %v478, 0.0
      %v482 = vsel %vm269, %v480, 0
      %484 = vmatpush.msra.mxu0 0.0
      %485 = vmatpush.msra.mxu0 0.0
      %486 = vmatpush.msra.mxu0 0.0
      %487 = vmatpush.msra.mxu0 0.0
      %488 = vmatpush.msra.mxu0 0.0
      %489 = vmatpush.msra.mxu0 0.0
      %490 = vmatpush.msra.mxu0 0.0
      %491 = vmatpush.msra.mxu0 0.0
      %492 = vmatpush.msra.mxu0 0.0
      %493 = vmatpush.msra.mxu0 0.0
      %494 = vmatpush.msra.mxu0 0.0
      %495 = vmatpush.msra.mxu0 0.0
      %496 = vmatpush.msra.mxu0 0.0
      %497 = vmatpush.msra.mxu0 0.0
      %498 = vmatpush.msra.mxu0 0.0
      %499 = vmatpush.msra.mxu0 %v482
      %500 = vmatmul.f32.gmra.mxu0 %v258
      %v501 = vpop.f32.mrf.mxu0
      %v502 = vadd.f32 0.0, %v501
      %503 = vmatmul.f32.gmra.mxu0 %v261
      %v504 = vpop.f32.mrf.mxu0
      %v505 = vadd.f32 0.0, %v504
      %506 = vmatmul.f32.gmra.mxu0 %v264
      %v507 = vpop.f32.mrf.mxu0
      %v508 = vadd.f32 0.0, %v507
      %509 = vmatmul.f32.gmra.mxu0 %v267
      %v510 = vpop.f32.mrf.mxu0
      %v511 = vadd.f32 0.0, %v510
      %512 = vdwg.mxu0
      %517 = vrot.lane.b32.xlu0 %v502, 127
      %v518 = vpop.permute.xlu0 %517
      %519 = vrot.lane.b32.xlu0 %v505, 127
      %v520 = vpop.permute.xlu0 %519
      %521 = vrot.lane.b32.xlu0 %v508, 127
      %v522 = vpop.permute.xlu0 %521
      %523 = vrot.lane.b32.xlu0 %v511, 127
      %v524 = vpop.permute.xlu0 %523
      %v529 = vadd.f32 %v502, %v518
      %v530 = vadd.f32 %v505, %v520
      %v531 = vadd.f32 %v508, %v522
      %v532 = vadd.f32 %v511, %v524
      %v533 = vxor.u32 %v529, 2147483648
      %v534 = vxor.u32 %v530, 2147483648
      %v535 = vxor.u32 %v531, 2147483648
      %v536 = vxor.u32 %v532, 2147483648
      %v537 = vmul.f32 %v533, 1.442695
      %v538 = vpow.pop %v537
      %v539 = vmul.f32 %v534, 1.442695
      %v540 = vpow.pop %v539
      %v541 = vmul.f32 %v535, 1.442695
      %v542 = vpow.pop %v541
      %v543 = vmul.f32 %v536, 1.442695
      %v544 = vpow.pop %v543
      %v545 = vadd.f32 %v538, 1.0
      %v546 = vadd.f32 %v540, 1.0
      %v547 = vadd.f32 %v542, 1.0
      %v548 = vadd.f32 %v544, 1.0
      %v549 = vrcp.pop %v545
      %v550 = vmul.f32 %v545, %v549
      %v551 = vsub.f32 1.0, %v550
      %v552 = vmul.f32 %v549, %v551
      %v553 = vadd.f32 %v549, %v552
      %vm554 = vweird.f32 %v545
      %vm555 = vweird.f32 %v549
      %vm556 = vmor %vm554, %vm555
      %v557 = vsel %vm556, %v549, %v553
      %v558 = vand.u32 2147483647, %v545
      %vm559 = vcmp.eq.f32.partialorder %v558, 8.507059e+37
      %v560 = vand.u32 %v545, 2147483648
      %v561 = vor.u32 1.1754944e-38, %v560
      %v562 = vsel %vm559, %v561, %v557
      %v563 = vmul.f32 1.0, %v562
      %v564 = vrcp.pop %v546
      %v565 = vmul.f32 %v546, %v564
      %v566 = vsub.f32 1.0, %v565
      %v567 = vmul.f32 %v564, %v566
      %v568 = vadd.f32 %v564, %v567
      %vm569 = vweird.f32 %v546
      %vm570 = vweird.f32 %v564
      %vm571 = vmor %vm569, %vm570
      %v572 = vsel %vm571, %v564, %v568
      %v573 = vand.u32 2147483647, %v546
      %vm574 = vcmp.eq.f32.partialorder %v573, 8.507059e+37
      %v575 = vand.u32 %v546, 2147483648
      %v576 = vor.u32 1.1754944e-38, %v575
      %v577 = vsel %vm574, %v576, %v572
      %v578 = vmul.f32 1.0, %v577
      %v579 = vrcp.pop %v547
      %v580 = vmul.f32 %v547, %v579
      %v581 = vsub.f32 1.0, %v580
      %v582 = vmul.f32 %v579, %v581
      %v583 = vadd.f32 %v579, %v582
      %vm584 = vweird.f32 %v547
      %vm585 = vweird.f32 %v579
      %vm586 = vmor %vm584, %vm585
      %v587 = vsel %vm586, %v579, %v583
      %v588 = vand.u32 2147483647, %v547
      %vm589 = vcmp.eq.f32.partialorder %v588, 8.507059e+37
      %v590 = vand.u32 %v547, 2147483648
      %v591 = vor.u32 1.1754944e-38, %v590
      %v592 = vsel %vm589, %v591, %v587
      %v593 = vmul.f32 1.0, %v592
      %v594 = vrcp.pop %v548
      %v595 = vmul.f32 %v548, %v594
      %v596 = vsub.f32 1.0, %v595
      %v597 = vmul.f32 %v594, %v596
      %v598 = vadd.f32 %v594, %v597
      %vm599 = vweird.f32 %v548
      %vm600 = vweird.f32 %v594
      %vm601 = vmor %vm599, %vm600
      %v602 = vsel %vm601, %v594, %v598
      %v603 = vand.u32 2147483647, %v548
      %vm604 = vcmp.eq.f32.partialorder %v603, 8.507059e+37
      %v605 = vand.u32 %v548, 2147483648
      %v606 = vor.u32 1.1754944e-38, %v605
      %v607 = vsel %vm604, %v606, %v602
      %v608 = vmul.f32 1.0, %v607
      %s609 = scalar_lea.vmem %s3, 32
      %610 = vst.msk [vmem:[%s609] sm:$0xff] %vm107, %v563
      %611 = vst.msk [vmem:[%s609 + $0x8] sm:$0xff] %vm107, %v578
      %612 = vst.msk [vmem:[%s609 + $0x10] sm:$0xff] %vm107, %v593
      %613 = vst.msk [vmem:[%s609 + $0x18] sm:$0xff] %vm107, %v608
    $region25: #{tpu_custom_call.1} parent=1 // pred_fallthru
      _
    // Predicated region
    $region26: #{tpu_custom_call.1} parent=1 // pred_check
      _
    $region27: #{tpu_custom_call.1} parent=1 // pred_check_branch
      %615 = sbr.rel (0) target = $region29
    $region28: #{tpu_custom_call.1} parent=1 // pred_region
      _
    $region29: #{tpu_custom_call.1} parent=1 // pred_fallthru
      _
    // Predicated region
    $region30: #{tpu_custom_call.1} parent=1 // pred_check
      _
    $region31: #{tpu_custom_call.1} parent=1 // pred_check_branch
      %617 = sbr.rel (0) target = $region33
    $region32: #{tpu_custom_call.1} parent=1 // pred_region
      _
    $region33: #{tpu_custom_call.1} parent=1 // pred_fallthru
      _
    %618 = vsyncpa [#allocation5], 1

</llo_original>
